<compile_context>
chip_gen: v7x
topology: tpu7x:2x2x1
jax: 0.10.0
libtpu: 0.0.40
codegen_flags: <defaults>
</compile_context>

<pallas_src>
import functools
import math

import jax
import jax.numpy as jnp
from jax.experimental import pallas as pl
from jax.experimental.pallas import tpu as pltpu

_VMEM_LIMIT = 32 * 1024 * 1024   # safe scoped-VMEM budget on v5e/v6e/v7x


# ---------------------------------------------------------------------------
# In-kernel math helpers (always f32)
# ---------------------------------------------------------------------------
def _erf(x):
    # Abramowitz & Stegun 7.1.26, max abs err ~1.5e-7 (exact-GELU semantics).
    a1, a2, a3, a4, a5 = (0.254829592, -0.284496736, 1.421413741,
                          -1.453152027, 1.061405429)
    p = 0.3275911
    sgn = jnp.where(x < 0.0, -1.0, 1.0)
    ax = jnp.abs(x)
    t = 1.0 / (1.0 + p * ax)
    poly = ((((a5 * t + a4) * t + a3) * t + a2) * t + a1) * t
    return sgn * (1.0 - poly * jnp.exp(-ax * ax))


def _gelu_exact(x):
    return 0.5 * x * (1.0 + _erf(x * (1.0 / math.sqrt(2.0))))


def _rmsnorm(x, scale, dim, eps):
    # torch SimpleRMSNorm: rms = ||x||_2 / sqrt(dim); x / (rms + eps) * scale
    l2 = jnp.sqrt(jnp.sum(x * x, axis=-1, keepdims=True))
    rms = l2 * (1.0 / math.sqrt(float(dim)))
    return x / (rms + eps) * scale


# ---------------------------------------------------------------------------
# Kernel 1: RMSNorm + Q/K/V projection (row-tiled)
# ---------------------------------------------------------------------------
def _qkv_kernel(x_ref, scale_ref, wq_ref, bq_ref, wk_ref, bk_ref,
                wv_ref, bv_ref, q_ref, k_ref, v_ref, *, dim, eps):
    xn = _rmsnorm(x_ref[...].astype(jnp.float32), scale_ref[...], dim, eps)
    xn_c = xn.astype(wq_ref.dtype)            # single cast per tile
    q = jnp.dot(xn_c, wq_ref[...], preferred_element_type=jnp.float32) + bq_ref[...]
    k = jnp.dot(xn_c, wk_ref[...], preferred_element_type=jnp.float32) + bk_ref[...]
    v = jnp.dot(xn_c, wv_ref[...], preferred_element_type=jnp.float32) + bv_ref[...]
    q_ref[...] = q.astype(q_ref.dtype)
    k_ref[...] = k.astype(k_ref.dtype)
    v_ref[...] = v.astype(v_ref.dtype)


# ---------------------------------------------------------------------------
# Kernel 2: flash attention (online softmax over KV axis) + W_out + residual
# ---------------------------------------------------------------------------
def _attn_kernel(q_ref, k_ref, v_ref, x_ref, wo_ref, bo_ref, o_ref,
                 m_ref, l_ref, acc_ref, *, sm_scale, approx_recip):
    ki = pl.program_id(2)

    @pl.when(ki == 0)
    def _():
        m_ref[...] = jnp.full(m_ref.shape, -jnp.inf, jnp.float32)
        l_ref[...] = jnp.zeros(l_ref.shape, jnp.float32)
        acc_ref[...] = jnp.zeros(acc_ref.shape, jnp.float32)

    # scores: contract over the head dim (K transpose folded into dot_general).
    s = jax.lax.dot_general(q_ref[...], k_ref[...],
                            dimension_numbers=(((1,), (1,)), ((), ())),
                            preferred_element_type=jnp.float32) * sm_scale

    m_prev = m_ref[...]
    m_new = jnp.maximum(m_prev, jnp.max(s, axis=-1, keepdims=True))
    alpha = jnp.exp(m_prev - m_new)
    p = jnp.exp(s - m_new)
    l_ref[...] = alpha * l_ref[...] + jnp.sum(p, axis=-1, keepdims=True)
    acc_ref[...] = alpha * acc_ref[...] + jnp.dot(
        p.astype(v_ref.dtype), v_ref[...], preferred_element_type=jnp.float32)
    m_ref[...] = m_new

    @pl.when(ki == pl.num_programs(2) - 1)
    def _():
        inv_l = pl.reciprocal(l_ref[...], approx=approx_recip)
        att = (acc_ref[...] * inv_l).astype(wo_ref.dtype)
        out = jnp.dot(att, wo_ref[...], preferred_element_type=jnp.float32)
        out = out + bo_ref[...] + x_ref[...].astype(jnp.float32)   # + residual
        o_ref[...] = out.astype(o_ref.dtype)


# ---------------------------------------------------------------------------
# Kernel 3: FFN (hidden dim streamed in chunks, f32 accumulator) + residual
# ---------------------------------------------------------------------------
def _ffn_kernel(x_ref, scale_ref, w1_ref, b1_ref, w2_ref, b2_ref, o_ref,
                n_ref, acc_ref, *, dim, eps):
    hi = pl.program_id(2)

    @pl.when(hi == 0)
    def _():
        n_ref[...] = _rmsnorm(x_ref[...].astype(jnp.float32), scale_ref[...],
                              dim, eps)
        acc_ref[...] = jnp.zeros(acc_ref.shape, jnp.float32)

    h = jnp.dot(n_ref[...].astype(w1_ref.dtype), w1_ref[...],
                preferred_element_type=jnp.float32) + b1_ref[...]
    h = _gelu_exact(h)
    acc_ref[...] += jnp.dot(h.astype(w2_ref.dtype), w2_ref[...],
                            preferred_element_type=jnp.float32)

    @pl.when(hi == pl.num_programs(2) - 1)
    def _():
        out = acc_ref[...] + b2_ref[...] + x_ref[...].astype(jnp.float32)
        o_ref[...] = out.astype(o_ref.dtype)


# ---------------------------------------------------------------------------
# Wrapper
# ---------------------------------------------------------------------------
def _pick_tile(n, target):
    t = min(n, target)
    return t if n % t == 0 else n


def differential_transformer_block(x, params, *, compute_dtype=jnp.bfloat16,
                                   q_tile=256, kv_tile=512, row_tile=256,
                                   hidden_tile=512, eps=1e-8):
    B, S, D = x.shape
    d = params["wq"].shape[-1]
    hidden = params["w1"].shape[-1]

    tq = _pick_tile(S, q_tile)
    tkv = _pick_tile(S, kv_tile)
    tr = _pick_tile(S, row_tile)
    th = _pick_tile(hidden, hidden_tile)

    f32 = jnp.float32
    cdt = jnp.dtype(compute_dtype)
    approx_recip = cdt != jnp.dtype(jnp.float32)
    itm = cdt.itemsize
    x_bytes = x.size * x.dtype.itemsize

    # Weights for MXU matmuls in compute dtype; scale/biases stay f32 (tiny).
    scale = params["scale"].astype(f32)
    wq = params["wq"].astype(cdt); bq = params["bq"].astype(f32)
    wk = params["wk"].astype(cdt); bk = params["bk"].astype(f32)
    wv = params["wv"].astype(cdt); bv = params["bv"].astype(f32)
    wo = params["wo"].astype(cdt); bo = params["bo"].astype(f32)
    w1 = params["w1"].astype(cdt); b1 = params["b1"].astype(f32)
    w2 = params["w2"].astype(cdt); b2 = params["b2"].astype(f32)

    # ---- kernel 1: RMSNorm + QKV projection --------------------------------
    proj_grid = pltpu.PrefetchScalarGridSpec(
        num_scalar_prefetch=0,
        grid=(B, S // tr),
        in_specs=[
            pl.BlockSpec((None, tr, D), lambda b, i: (b, i, 0)),
            pl.BlockSpec((1, D), lambda b, i: (0, 0)),
            pl.BlockSpec((D, d), lambda b, i: (0, 0)),
            pl.BlockSpec((1, d), lambda b, i: (0, 0)),
            pl.BlockSpec((D, d), lambda b, i: (0, 0)),
            pl.BlockSpec((1, d), lambda b, i: (0, 0)),
            pl.BlockSpec((D, d), lambda b, i: (0, 0)),
            pl.BlockSpec((1, d), lambda b, i: (0, 0)),
        ],
        out_specs=[
            pl.BlockSpec((None, tr, d), lambda b, i: (b, i, 0)),
            pl.BlockSpec((None, tr, d), lambda b, i: (b, i, 0)),
            pl.BlockSpec((None, tr, d), lambda b, i: (b, i, 0)),
        ],
    )
    q, k, v = pl.pallas_call(
        functools.partial(_qkv_kernel, dim=D, eps=eps),
        out_shape=(jax.ShapeDtypeStruct((B, S, d), cdt),) * 3,
        grid_spec=proj_grid,
        compiler_params=pltpu.CompilerParams(
            dimension_semantics=("parallel", "parallel"),
            vmem_limit_bytes=_VMEM_LIMIT),
        cost_estimate=pl.CostEstimate(
            flops=6 * B * S * D * d,
            transcendentals=0,
            bytes_accessed=x_bytes + 3 * D * d * itm + 3 * B * S * d * itm),
    )(x, scale, wq, bq, wk, bk, wv, bv)

    # ---- kernel 2: flash attention + W_out + residual ----------------------
    attn_grid = pltpu.PrefetchScalarGridSpec(
        num_scalar_prefetch=0,
        grid=(B, S // tq, S // tkv),
        in_specs=[
            pl.BlockSpec((None, tq, d), lambda b, qi, ki: (b, qi, 0)),
            pl.BlockSpec((None, tkv, d), lambda b, qi, ki: (b, ki, 0)),
            pl.BlockSpec((None, tkv, d), lambda b, qi, ki: (b, ki, 0)),
            pl.BlockSpec((None, tq, D), lambda b, qi, ki: (b, qi, 0)),
            pl.BlockSpec((d, D), lambda b, qi, ki: (0, 0)),
            pl.BlockSpec((1, D), lambda b, qi, ki: (0, 0)),
        ],
        out_specs=pl.BlockSpec((None, tq, D), lambda b, qi, ki: (b, qi, 0)),
        scratch_shapes=[
            pltpu.VMEM((tq, 1), jnp.float32),   # running max m
            pltpu.VMEM((tq, 1), jnp.float32),   # running sum l
            pltpu.VMEM((tq, d), jnp.float32),   # running accumulator
        ],
    )
    x2 = pl.pallas_call(
        functools.partial(_attn_kernel, sm_scale=1.0 / math.sqrt(float(d)),
                          approx_recip=approx_recip),
        out_shape=jax.ShapeDtypeStruct((B, S, D), x.dtype),
        grid_spec=attn_grid,
        compiler_params=pltpu.CompilerParams(
            dimension_semantics=("parallel", "parallel", "arbitrary"),
            vmem_limit_bytes=_VMEM_LIMIT),
        cost_estimate=pl.CostEstimate(
            flops=4 * B * S * S * d + 2 * B * S * d * D,
            transcendentals=B * S * S,
            bytes_accessed=3 * B * S * d * itm + 2 * x_bytes + d * D * itm),
    )(q, k, v, x, wo, bo)

    # ---- kernel 3: FFN (hidden-chunked) + residual --------------------------
    ffn_grid = pltpu.PrefetchScalarGridSpec(
        num_scalar_prefetch=0,
        grid=(B, S // tr, hidden // th),
        in_specs=[
            pl.BlockSpec((None, tr, D), lambda b, ri, hi: (b, ri, 0)),
            pl.BlockSpec((1, D), lambda b, ri, hi: (0, 0)),
            pl.BlockSpec((D, th), lambda b, ri, hi: (0, hi)),   # w1 chunk
            pl.BlockSpec((1, th), lambda b, ri, hi: (0, hi)),   # b1 chunk
            pl.BlockSpec((th, D), lambda b, ri, hi: (hi, 0)),   # w2 chunk
            pl.BlockSpec((1, D), lambda b, ri, hi: (0, 0)),
        ],
        out_specs=pl.BlockSpec((None, tr, D), lambda b, ri, hi: (b, ri, 0)),
        scratch_shapes=[
            pltpu.VMEM((tr, D), jnp.float32),   # normed rows (computed once)
            pltpu.VMEM((tr, D), jnp.float32),   # f32 accumulator
        ],
    )
    out = pl.pallas_call(
        functools.partial(_ffn_kernel, dim=D, eps=eps),
        out_shape=jax.ShapeDtypeStruct((B, S, D), x.dtype),
        grid_spec=ffn_grid,
        compiler_params=pltpu.CompilerParams(
            dimension_semantics=("parallel", "parallel", "arbitrary"),
            vmem_limit_bytes=_VMEM_LIMIT),
        cost_estimate=pl.CostEstimate(
            flops=4 * B * S * D * hidden,
            transcendentals=B * S * hidden,
            bytes_accessed=2 * x_bytes + 2 * D * hidden * itm),
    )(x2, scale, w1, b1, w2, b2)
    return out


# ---------------------------------------------------------------------------
# Pure-JAX reference (exact semantics of the PyTorch module, f32-HIGHEST)
# ---------------------------------------------------------------------------
def _reference(x, p, eps=1e-8):
    P = jax.lax.Precision.HIGHEST
    D = x.shape[-1]
    d = p["wq"].shape[-1]

    def norm(y):
        l2 = jnp.sqrt(jnp.sum(y * y, axis=-1, keepdims=True))
        return y / (l2 / math.sqrt(float(D)) + eps) * p["scale"][0]

    n1 = norm(x)
    q = jnp.dot(n1, p["wq"], precision=P) + p["bq"][0]
    k = jnp.dot(n1, p["wk"], precision=P) + p["bk"][0]
    v = jnp.dot(n1, p["wv"], precision=P) + p["bv"][0]
    scores = jnp.einsum("bqd,bkd->bqk", q, k, precision=P) / math.sqrt(float(d))
    w = jax.nn.softmax(scores, axis=-1)
    att = jnp.dot(jnp.einsum("bqk,bkd->bqd", w, v, precision=P),
                  p["wo"], precision=P) + p["bo"][0]
    x2 = att + x
    n2 = norm(x2)
    h = jax.nn.gelu(jnp.dot(n2, p["w1"], precision=P) + p["b1"][0],
                    approximate=False)
    return jnp.dot(h, p["w2"], precision=P) + p["b2"][0] + x2


# ---------------------------------------------------------------------------
def _init_params(key, dim, heads):
    d = dim // heads
    hidden = dim * 4
    ks = jax.random.split(key, 6)

    def lin(k, fan_in, fan_out):
        bound = 1.0 / math.sqrt(fan_in)
        kw, kb = jax.random.split(k)
        w = jax.random.uniform(kw, (fan_in, fan_out), jnp.float32, -bound, bound)
        b = jax.random.uniform(kb, (1, fan_out), jnp.float32, -bound, bound)
        return w, b

    wq, bq = lin(ks[0], dim, d)
    wk, bk = lin(ks[1], dim, d)
    wv, bv = lin(ks[2], dim, d)
    wo, bo = lin(ks[3], d, dim)
    w1, b1 = lin(ks[4], dim, hidden)
    w2, b2 = lin(ks[5], hidden, dim)
    scale = jnp.ones((1, dim), jnp.float32)   # SimpleRMSNorm scale (init = ones)
    return dict(scale=scale, wq=wq, bq=bq, wk=wk, bk=bk, wv=wv, bv=bv,
                wo=wo, bo=bo, w1=w1, b1=b1, w2=w2, b2=b2)


if __name__ == "__main__":
    # dim=128, heads=4 -> head dim d=32, ffn hidden=512; S=128 with 64/256
    # tiles so the flash KV loop and the FFN hidden-chunk loop both iterate.
    B, S, D, H = 2, 128, 128, 4

    key = jax.random.PRNGKey(0)
    kx, kp = jax.random.split(key)
    x = jax.random.normal(kx, (B, S, D), jnp.float32)
    params = _init_params(kp, D, H)

    ref = _reference(x, params)
    tiles = dict(q_tile=64, kv_tile=64, row_tile=64, hidden_tile=256)

    # f32 compute path: tight check against the exact reference.
    out_f32 = jax.block_until_ready(
        differential_transformer_block(x, params, compute_dtype=jnp.float32,
                                       **tiles))
    assert out_f32.shape == (B, S, D)
    err32 = float(jnp.max(jnp.abs(out_f32 - ref)))
    assert jnp.allclose(out_f32, ref, rtol=2e-4, atol=2e-4), (
        f"f32 path max abs diff {err32}")

    # bf16 compute path (default / performance mode): looser tolerance.
    out_bf16 = jax.block_until_ready(
        differential_transformer_block(x, params, compute_dtype=jnp.bfloat16,
                                       **tiles))
    errbf = float(jnp.max(jnp.abs(out_bf16 - ref)))
    assert jnp.allclose(out_bf16, ref, rtol=7e-2, atol=7e-2), (
        f"bf16 path max abs diff {errbf}")

    print("KERNEL_OK")
</pallas_src>

<mosaic_0001>
module attributes {stable_mosaic.version = 11 : i64} {
  func.func @_qkv_kernel(%arg0: i32, %arg1: i32, %arg2: memref<1x64x128xf32, #tpu.memory_space<vmem>>, %arg3: memref<1x128xf32, #tpu.memory_space<vmem>>, %arg4: memref<128x32xf32, #tpu.memory_space<vmem>>, %arg5: memref<1x32xf32, #tpu.memory_space<vmem>>, %arg6: memref<128x32xf32, #tpu.memory_space<vmem>>, %arg7: memref<1x32xf32, #tpu.memory_space<vmem>>, %arg8: memref<128x32xf32, #tpu.memory_space<vmem>>, %arg9: memref<1x32xf32, #tpu.memory_space<vmem>>, %arg10: memref<1x64x32xf32, #tpu.memory_space<vmem>>, %arg11: memref<1x64x32xf32, #tpu.memory_space<vmem>>, %arg12: memref<1x64x32xf32, #tpu.memory_space<vmem>>) attributes {dimension_semantics = [#tpu.dimension_semantics<parallel>, #tpu.dimension_semantics<parallel>], iteration_bounds = array<i64: 2, 2>, scalar_prefetch = 0 : i64, scratch_operands = 0 : i64, tpu.core_type = #tpu.core_type<tc>, window_params = [{transform_indices = @transform_0, window_bounds = array<i64: 1, 64, 128>}, {pipeline_mode = #tpu.pipeline_mode<synchronous>, transform_indices = @transform_1, window_bounds = array<i64: 1, 128>}, {pipeline_mode = #tpu.pipeline_mode<synchronous>, transform_indices = @transform_2, window_bounds = array<i64: 128, 32>}, {pipeline_mode = #tpu.pipeline_mode<synchronous>, transform_indices = @transform_3, window_bounds = array<i64: 1, 32>}, {pipeline_mode = #tpu.pipeline_mode<synchronous>, transform_indices = @transform_4, window_bounds = array<i64: 128, 32>}, {pipeline_mode = #tpu.pipeline_mode<synchronous>, transform_indices = @transform_5, window_bounds = array<i64: 1, 32>}, {pipeline_mode = #tpu.pipeline_mode<synchronous>, transform_indices = @transform_6, window_bounds = array<i64: 128, 32>}, {pipeline_mode = #tpu.pipeline_mode<synchronous>, transform_indices = @transform_7, window_bounds = array<i64: 1, 32>}, {transform_indices = @transform_8, window_bounds = array<i64: 1, 64, 32>}, {transform_indices = @transform_9, window_bounds = array<i64: 1, 64, 32>}, {transform_indices = @transform_10, window_bounds = array<i64: 1, 64, 32>}]} {
    %c0 = arith.constant 0 : index
    %c0_0 = arith.constant 0 : index
    %c0_1 = arith.constant 0 : index
    %0 = vector.load %arg2[%c0, %c0_0, %c0_1] : memref<1x64x128xf32, #tpu.memory_space<vmem>>, vector<1x64x128xf32>
    %1 = vector.shape_cast %0 : vector<1x64x128xf32> to vector<64x128xf32>
    %c0_2 = arith.constant 0 : index
    %c0_3 = arith.constant 0 : index
    %2 = vector.load %arg3[%c0_2, %c0_3] : memref<1x128xf32, #tpu.memory_space<vmem>>, vector<1x128xf32>
    %3 = arith.mulf %1, %1 : vector<64x128xf32>
    %cst = arith.constant dense<0.000000e+00> : vector<64xf32>
    %4 = vector.multi_reduction <add>, %3, %cst [1] : vector<64x128xf32> to vector<64xf32>
    %5 = vector.shape_cast %4 : vector<64xf32> to vector<64x1xf32>
    %6 = math.sqrt %5 : vector<64x1xf32>
    %cst_4 = arith.constant 0.0883883461 : f32
    %7 = vector.broadcast %cst_4 : f32 to vector<64x1xf32>
    %8 = arith.mulf %6, %7 : vector<64x1xf32>
    %cst_5 = arith.constant 9.99999993E-9 : f32
    %9 = vector.broadcast %cst_5 : f32 to vector<64x1xf32>
    %10 = arith.addf %8, %9 : vector<64x1xf32>
    %11 = vector.broadcast %10 : vector<64x1xf32> to vector<64x128xf32>
    %12 = arith.divf %1, %11 : vector<64x128xf32>
    %13 = vector.broadcast %2 : vector<1x128xf32> to vector<64x128xf32>
    %14 = arith.mulf %12, %13 : vector<64x128xf32>
    %c0_6 = arith.constant 0 : index
    %c0_7 = arith.constant 0 : index
    %15 = vector.load %arg4[%c0_6, %c0_7] : memref<128x32xf32, #tpu.memory_space<vmem>>, vector<128x32xf32>
    %cst_8 = arith.constant dense<0.000000e+00> : vector<64x32xf32>
    %16 = tpu.matmul %14, %15, %cst_8 {dimension_numbers = #tpu.dot_dimension_numbers<[1], [0], [0], [1], [0, 0, 1, 1], [], []>} : vector<64x128xf32>, vector<128x32xf32>, vector<64x32xf32> -> vector<64x32xf32>
    %c0_9 = arith.constant 0 : index
    %c0_10 = arith.constant 0 : index
    %17 = vector.load %arg5[%c0_9, %c0_10] : memref<1x32xf32, #tpu.memory_space<vmem>>, vector<1x32xf32>
    %18 = vector.broadcast %17 : vector<1x32xf32> to vector<64x32xf32>
    %19 = arith.addf %16, %18 : vector<64x32xf32>
    %c0_11 = arith.constant 0 : index
    %c0_12 = arith.constant 0 : index
    %20 = vector.load %arg6[%c0_11, %c0_12] : memref<128x32xf32, #tpu.memory_space<vmem>>, vector<128x32xf32>
    %cst_13 = arith.constant dense<0.000000e+00> : vector<64x32xf32>
    %21 = tpu.matmul %14, %20, %cst_13 {dimension_numbers = #tpu.dot_dimension_numbers<[1], [0], [0], [1], [0, 0, 1, 1], [], []>} : vector<64x128xf32>, vector<128x32xf32>, vector<64x32xf32> -> vector<64x32xf32>
    %c0_14 = arith.constant 0 : index
    %c0_15 = arith.constant 0 : index
    %22 = vector.load %arg7[%c0_14, %c0_15] : memref<1x32xf32, #tpu.memory_space<vmem>>, vector<1x32xf32>
    %23 = vector.broadcast %22 : vector<1x32xf32> to vector<64x32xf32>
    %24 = arith.addf %21, %23 : vector<64x32xf32>
    %c0_16 = arith.constant 0 : index
    %c0_17 = arith.constant 0 : index
    %25 = vector.load %arg8[%c0_16, %c0_17] : memref<128x32xf32, #tpu.memory_space<vmem>>, vector<128x32xf32>
    %cst_18 = arith.constant dense<0.000000e+00> : vector<64x32xf32>
    %26 = tpu.matmul %14, %25, %cst_18 {dimension_numbers = #tpu.dot_dimension_numbers<[1], [0], [0], [1], [0, 0, 1, 1], [], []>} : vector<64x128xf32>, vector<128x32xf32>, vector<64x32xf32> -> vector<64x32xf32>
    %c0_19 = arith.constant 0 : index
    %c0_20 = arith.constant 0 : index
    %27 = vector.load %arg9[%c0_19, %c0_20] : memref<1x32xf32, #tpu.memory_space<vmem>>, vector<1x32xf32>
    %28 = vector.broadcast %27 : vector<1x32xf32> to vector<64x32xf32>
    %29 = arith.addf %26, %28 : vector<64x32xf32>
    %c0_21 = arith.constant 0 : index
    %c0_22 = arith.constant 0 : index
    %c0_23 = arith.constant 0 : index
    %30 = vector.load %arg10[%c0_21, %c0_22, %c0_23] : memref<1x64x32xf32, #tpu.memory_space<vmem>>, vector<1x64x32xf32>
    %31 = vector.shape_cast %30 : vector<1x64x32xf32> to vector<64x32xf32>
    %32 = vector.shape_cast %19 : vector<64x32xf32> to vector<1x64x32xf32>
    tpu.vector_store %arg10[%c0_21, %c0_22, %c0_23], %32 {strides = array<i32>} : memref<1x64x32xf32, #tpu.memory_space<vmem>>, vector<1x64x32xf32>,
    %c0_24 = arith.constant 0 : index
    %c0_25 = arith.constant 0 : index
    %c0_26 = arith.constant 0 : index
    %33 = vector.load %arg11[%c0_24, %c0_25, %c0_26] : memref<1x64x32xf32, #tpu.memory_space<vmem>>, vector<1x64x32xf32>
    %34 = vector.shape_cast %33 : vector<1x64x32xf32> to vector<64x32xf32>
    %35 = vector.shape_cast %24 : vector<64x32xf32> to vector<1x64x32xf32>
    tpu.vector_store %arg11[%c0_24, %c0_25, %c0_26], %35 {strides = array<i32>} : memref<1x64x32xf32, #tpu.memory_space<vmem>>, vector<1x64x32xf32>,
    %c0_27 = arith.constant 0 : index
    %c0_28 = arith.constant 0 : index
    %c0_29 = arith.constant 0 : index
    %36 = vector.load %arg12[%c0_27, %c0_28, %c0_29] : memref<1x64x32xf32, #tpu.memory_space<vmem>>, vector<1x64x32xf32>
    %37 = vector.shape_cast %36 : vector<1x64x32xf32> to vector<64x32xf32>
    %38 = vector.shape_cast %29 : vector<64x32xf32> to vector<1x64x32xf32>
    tpu.vector_store %arg12[%c0_27, %c0_28, %c0_29], %38 {strides = array<i32>} : memref<1x64x32xf32, #tpu.memory_space<vmem>>, vector<1x64x32xf32>,
    return
  }
  func.func @transform_0(%arg0: i32, %arg1: i32) -> (i32, i32, i32) {
    %c0_i32 = arith.constant 0 : i32
    %c0_i32_0 = arith.constant 0 : i32
    return %arg0, %arg1, %c0_i32 : i32, i32, i32
  }
  func.func @transform_1(%arg0: i32, %arg1: i32) -> (i32, i32) {
    %c0_i32 = arith.constant 0 : i32
    %c0_i32_0 = arith.constant 0 : i32
    %c0_i32_1 = arith.constant 0 : i32
    return %c0_i32, %c0_i32_0 : i32, i32
  }
  func.func @transform_2(%arg0: i32, %arg1: i32) -> (i32, i32) {
    %c0_i32 = arith.constant 0 : i32
    %c0_i32_0 = arith.constant 0 : i32
    %c0_i32_1 = arith.constant 0 : i32
    return %c0_i32, %c0_i32_0 : i32, i32
  }
  func.func @transform_3(%arg0: i32, %arg1: i32) -> (i32, i32) {
    %c0_i32 = arith.constant 0 : i32
    %c0_i32_0 = arith.constant 0 : i32
    %c0_i32_1 = arith.constant 0 : i32
    return %c0_i32, %c0_i32_0 : i32, i32
  }
  func.func @transform_4(%arg0: i32, %arg1: i32) -> (i32, i32) {
    %c0_i32 = arith.constant 0 : i32
    %c0_i32_0 = arith.constant 0 : i32
    %c0_i32_1 = arith.constant 0 : i32
    return %c0_i32, %c0_i32_0 : i32, i32
  }
  func.func @transform_5(%arg0: i32, %arg1: i32) -> (i32, i32) {
    %c0_i32 = arith.constant 0 : i32
    %c0_i32_0 = arith.constant 0 : i32
    %c0_i32_1 = arith.constant 0 : i32
    return %c0_i32, %c0_i32_0 : i32, i32
  }
  func.func @transform_6(%arg0: i32, %arg1: i32) -> (i32, i32) {
    %c0_i32 = arith.constant 0 : i32
    %c0_i32_0 = arith.constant 0 : i32
    %c0_i32_1 = arith.constant 0 : i32
    return %c0_i32, %c0_i32_0 : i32, i32
  }
  func.func @transform_7(%arg0: i32, %arg1: i32) -> (i32, i32) {
    %c0_i32 = arith.constant 0 : i32
    %c0_i32_0 = arith.constant 0 : i32
    %c0_i32_1 = arith.constant 0 : i32
    return %c0_i32, %c0_i32_0 : i32, i32
  }
  func.func @transform_8(%arg0: i32, %arg1: i32) -> (i32, i32, i32) {
    %c0_i32 = arith.constant 0 : i32
    %c0_i32_0 = arith.constant 0 : i32
    return %arg0, %arg1, %c0_i32 : i32, i32, i32
  }
  func.func @transform_9(%arg0: i32, %arg1: i32) -> (i32, i32, i32) {
    %c0_i32 = arith.constant 0 : i32
    %c0_i32_0 = arith.constant 0 : i32
    return %arg0, %arg1, %c0_i32 : i32, i32, i32
  }
  func.func @transform_10(%arg0: i32, %arg1: i32) -> (i32, i32, i32) {
    %c0_i32 = arith.constant 0 : i32
    %c0_i32_0 = arith.constant 0 : i32
    return %arg0, %arg1, %c0_i32 : i32, i32, i32
  }
}

</mosaic_0001>

<llo_original>
// kernel: tpu_custom_call.1
$region0: #{tpu_custom_call.1}
  #allocation0 [shape = 'u32[]', space=smem, size = 0x4, offset = 0x4, fixed_abs, tag = 'smem constant byte address 0x4 - core index']
  #allocation1 [shape = 'u32[144,128]{1,0:T(1,128)}', space=vmem, size = 0x12000, scoped, tag = 'internal scratch']
  %s0 = inlined_call_operand.vmem [shape: f32[2,128,128], index: 0, kind: input, shape index: {}]
  %s1 = inlined_call_operand.vmem [shape: f32[1,128], index: 1, kind: input, shape index: {}]
  %s2 = inlined_call_operand.vmem [shape: f32[128,32], index: 2, kind: input, shape index: {}]
  %s3 = inlined_call_operand.vmem [shape: f32[1,32], index: 3, kind: input, shape index: {}]
  %s4 = inlined_call_operand.vmem [shape: f32[128,32], index: 4, kind: input, shape index: {}]
  %s5 = inlined_call_operand.vmem [shape: f32[1,32], index: 5, kind: input, shape index: {}]
  %s6 = inlined_call_operand.vmem [shape: f32[128,32], index: 6, kind: input, shape index: {}]
  %s7 = inlined_call_operand.vmem [shape: f32[1,32], index: 7, kind: input, shape index: {}]
  %s8 = inlined_call_operand.vmem [shape: f32[2,128,32], index: 8, kind: output, shape index: {0}]
  %s9 = inlined_call_operand.vmem [shape: f32[2,128,32], index: 9, kind: output, shape index: {1}]
  %s10 = inlined_call_operand.vmem [shape: f32[2,128,32], index: 10, kind: output, shape index: {2}]
  %11 = xla_tuple %s8, %s9, %s10
  %s12 = sld [smem:[#allocation0]]
  $region81: #{tpu_custom_call.1} parent=0
    _
  %s14 = ssub.s32 1, %s12
  %s15 = scalar_select 0, %s14, %s12
  loop: start=0, step=1, limit=6
  $region2: #{tpu_custom_call.1} parent=0 // loop_pre_header
    _
  $region3: #{tpu_custom_call.1} parent=0 // loop_header
    %s17 = sphi 0, %s21
    %p18 = scmp.ge.s32.totalorder %s17, 6
    %s24 = sphi 0, %s36
    %s25 = sphi 0, %s32
    %s26 = sphi 0, %s24
    %s27 = sphi 0, %s25
    %s28 = sphi 0, %s26
    %s29 = sphi 0, %s27
    %s41 = sphi 0, %s43
    %s44 = sphi 0, %s41
    %s45 = sphi 0, %s44
    %s61 = sphi 0, %s45
    %s65 = sphi 0, %s65
    %s67 = sphi 0, %s65
    %s68 = sphi 0, %s67
    %s82 = sphi 0, %s68
    %s86 = sphi 0, %s86
    %s88 = sphi 0, %s86
    %s89 = sphi 0, %s88
    %s103 = sphi 0, %s89
    %s107 = sphi 0, %s107
    %s109 = sphi 0, %s107
    %s110 = sphi 0, %s109
    %s124 = sphi 0, %s110
    %s128 = sphi 0, %s128
    %s130 = sphi 0, %s128
    %s131 = sphi 0, %s130
    %s145 = sphi 0, %s131
    %s149 = sphi 0, %s149
    %s151 = sphi 0, %s149
    %s152 = sphi 0, %s151
    %s166 = sphi 0, %s152
    %s170 = sphi 0, %s170
    %s172 = sphi 0, %s170
    %s173 = sphi 0, %s172
    %s187 = sphi 0, %s173
    %s191 = sphi 0, %s191
    %s193 = sphi 0, %s191
    %s194 = sphi 0, %s193
    %s208 = sphi 0, %s194
    %s216 = sphi 0, %s218
    %s219 = sphi 0, %s216
    %s220 = sphi 0, %s219
    %s236 = sphi 0, %s220
    %s244 = sphi 0, %s246
    %s247 = sphi 0, %s244
    %s248 = sphi 0, %s247
    %s264 = sphi 0, %s248
    %s272 = sphi 0, %s274
    %s275 = sphi 0, %s272
    %s276 = sphi 0, %s275
    %s292 = sphi 0, %s276
  $region4: #{tpu_custom_call.1} parent=0 // loop_header_branch
    %20 = sbr.rel (%p18) target = $region8
  $region5: #{tpu_custom_call.1} parent=0 // loop_body
    %s22 = ssub.s32 %s17, 1
    %s23 = ssub.s32 %s17, 2
    %s30 = sadd.s32 1, %s25
    %p31 = scmp.ge.s32.totalorder %s30, 2
    %s32 = scalar_select %p31, 0, %s30
    %s33 = sadd.s32 1, %s24
    %s34 = scalar_select %p31, %s33, %s24
    %p35 = scmp.ge.s32.totalorder %s34, 2
    %s36 = scalar_select %p35, 0, %s34
    %s37 = ssub.s32 %s24, %s36
    %s38 = ssub.s32 %s25, %s32
    %s39 = sor.u32 %s37, %s38
    %p40 = scmp.eq.s32.totalorder %s39, 0
    %s42 = sadd.s32 %s41, 1
    %s43 = scalar_select %p40, %s41, %s42
    %p46 = pneg %p40
    %p47 = scmp.eq.s32.totalorder %s17, 3
    %p48 = por %p46, %p47
    %p49 = scmp.ne.s32.totalorder %s41, %s44
    %p50 = scmp.eq.s32.totalorder %s17, 0
    %p51 = por %p49, %p50
    %p52 = scmp.ne.s32.totalorder %s41, %s44
    %p53 = scmp.eq.s32.totalorder %s22, 3
    %p54 = por %p52, %p53
    %p55 = scmp.ne.s32.totalorder %s44, %s45
    %p56 = scmp.eq.s32.totalorder %s22, 0
    %p57 = por %p55, %p56
    %p58 = scmp.ne.s32.totalorder %s44, %s45
    %p59 = scmp.eq.s32.totalorder %s23, 3
    %p60 = por %p58, %p59
    %p62 = scmp.ne.s32.totalorder %s45, %s61
    %p63 = scmp.eq.s32.totalorder %s23, 0
    %p64 = por %p62, %p63
    %s66 = sadd.s32 %s65, 1
    %p69 = scmp.eq.s32.totalorder %s17, 3
    %p70 = scmp.ne.s32.totalorder %s65, %s67
    %p71 = scmp.eq.s32.totalorder %s17, 0
    %p72 = por %p70, %p71
    %p73 = scmp.ne.s32.totalorder %s65, %s67
    %p74 = scmp.eq.s32.totalorder %s22, 3
    %p75 = por %p73, %p74
    %p76 = scmp.ne.s32.totalorder %s67, %s68
    %p77 = scmp.eq.s32.totalorder %s22, 0
    %p78 = por %p76, %p77
    %p79 = scmp.ne.s32.totalorder %s67, %s68
    %p80 = scmp.eq.s32.totalorder %s23, 3
    %p81 = por %p79, %p80
    %p83 = scmp.ne.s32.totalorder %s68, %s82
    %p84 = scmp.eq.s32.totalorder %s23, 0
    %p85 = por %p83, %p84
    %s87 = sadd.s32 %s86, 1
    %p90 = scmp.eq.s32.totalorder %s17, 3
    %p91 = scmp.ne.s32.totalorder %s86, %s88
    %p92 = scmp.eq.s32.totalorder %s17, 0
    %p93 = por %p91, %p92
    %p94 = scmp.ne.s32.totalorder %s86, %s88
    %p95 = scmp.eq.s32.totalorder %s22, 3
    %p96 = por %p94, %p95
    %p97 = scmp.ne.s32.totalorder %s88, %s89
    %p98 = scmp.eq.s32.totalorder %s22, 0
    %p99 = por %p97, %p98
    %p100 = scmp.ne.s32.totalorder %s88, %s89
    %p101 = scmp.eq.s32.totalorder %s23, 3
    %p102 = por %p100, %p101
    %p104 = scmp.ne.s32.totalorder %s89, %s103
    %p105 = scmp.eq.s32.totalorder %s23, 0
    %p106 = por %p104, %p105
    %s108 = sadd.s32 %s107, 1
    %p111 = scmp.eq.s32.totalorder %s17, 3
    %p112 = scmp.ne.s32.totalorder %s107, %s109
    %p113 = scmp.eq.s32.totalorder %s17, 0
    %p114 = por %p112, %p113
    %p115 = scmp.ne.s32.totalorder %s107, %s109
    %p116 = scmp.eq.s32.totalorder %s22, 3
    %p117 = por %p115, %p116
    %p118 = scmp.ne.s32.totalorder %s109, %s110
    %p119 = scmp.eq.s32.totalorder %s22, 0
    %p120 = por %p118, %p119
    %p121 = scmp.ne.s32.totalorder %s109, %s110
    %p122 = scmp.eq.s32.totalorder %s23, 3
    %p123 = por %p121, %p122
    %p125 = scmp.ne.s32.totalorder %s110, %s124
    %p126 = scmp.eq.s32.totalorder %s23, 0
    %p127 = por %p125, %p126
    %s129 = sadd.s32 %s128, 1
    %p132 = scmp.eq.s32.totalorder %s17, 3
    %p133 = scmp.ne.s32.totalorder %s128, %s130
    %p134 = scmp.eq.s32.totalorder %s17, 0
    %p135 = por %p133, %p134
    %p136 = scmp.ne.s32.totalorder %s128, %s130
    %p137 = scmp.eq.s32.totalorder %s22, 3
    %p138 = por %p136, %p137
    %p139 = scmp.ne.s32.totalorder %s130, %s131
    %p140 = scmp.eq.s32.totalorder %s22, 0
    %p141 = por %p139, %p140
    %p142 = scmp.ne.s32.totalorder %s130, %s131
    %p143 = scmp.eq.s32.totalorder %s23, 3
    %p144 = por %p142, %p143
    %p146 = scmp.ne.s32.totalorder %s131, %s145
    %p147 = scmp.eq.s32.totalorder %s23, 0
    %p148 = por %p146, %p147
    %s150 = sadd.s32 %s149, 1
    %p153 = scmp.eq.s32.totalorder %s17, 3
    %p154 = scmp.ne.s32.totalorder %s149, %s151
    %p155 = scmp.eq.s32.totalorder %s17, 0
    %p156 = por %p154, %p155
    %p157 = scmp.ne.s32.totalorder %s149, %s151
    %p158 = scmp.eq.s32.totalorder %s22, 3
    %p159 = por %p157, %p158
    %p160 = scmp.ne.s32.totalorder %s151, %s152
    %p161 = scmp.eq.s32.totalorder %s22, 0
    %p162 = por %p160, %p161
    %p163 = scmp.ne.s32.totalorder %s151, %s152
    %p164 = scmp.eq.s32.totalorder %s23, 3
    %p165 = por %p163, %p164
    %p167 = scmp.ne.s32.totalorder %s152, %s166
    %p168 = scmp.eq.s32.totalorder %s23, 0
    %p169 = por %p167, %p168
    %s171 = sadd.s32 %s170, 1
    %p174 = scmp.eq.s32.totalorder %s17, 3
    %p175 = scmp.ne.s32.totalorder %s170, %s172
    %p176 = scmp.eq.s32.totalorder %s17, 0
    %p177 = por %p175, %p176
    %p178 = scmp.ne.s32.totalorder %s170, %s172
    %p179 = scmp.eq.s32.totalorder %s22, 3
    %p180 = por %p178, %p179
    %p181 = scmp.ne.s32.totalorder %s172, %s173
    %p182 = scmp.eq.s32.totalorder %s22, 0
    %p183 = por %p181, %p182
    %p184 = scmp.ne.s32.totalorder %s172, %s173
    %p185 = scmp.eq.s32.totalorder %s23, 3
    %p186 = por %p184, %p185
    %p188 = scmp.ne.s32.totalorder %s173, %s187
    %p189 = scmp.eq.s32.totalorder %s23, 0
    %p190 = por %p188, %p189
    %s192 = sadd.s32 %s191, 1
    %p195 = scmp.eq.s32.totalorder %s17, 3
    %p196 = scmp.ne.s32.totalorder %s191, %s193
    %p197 = scmp.eq.s32.totalorder %s17, 0
    %p198 = por %p196, %p197
    %p199 = scmp.ne.s32.totalorder %s191, %s193
    %p200 = scmp.eq.s32.totalorder %s22, 3
    %p201 = por %p199, %p200
    %p202 = scmp.ne.s32.totalorder %s193, %s194
    %p203 = scmp.eq.s32.totalorder %s22, 0
    %p204 = por %p202, %p203
    %p205 = scmp.ne.s32.totalorder %s193, %s194
    %p206 = scmp.eq.s32.totalorder %s23, 3
    %p207 = por %p205, %p206
    %p209 = scmp.ne.s32.totalorder %s194, %s208
    %p210 = scmp.eq.s32.totalorder %s23, 0
    %p211 = por %p209, %p210
    %s212 = ssub.s32 %s24, %s36
    %s213 = ssub.s32 %s25, %s32
    %s214 = sor.u32 %s212, %s213
    %p215 = scmp.eq.s32.totalorder %s214, 0
    %s217 = sadd.s32 %s216, 1
    %s218 = scalar_select %p215, %s216, %s217
    %p221 = pneg %p215
    %p222 = scmp.eq.s32.totalorder %s17, 3
    %p223 = por %p221, %p222
    %p224 = scmp.ne.s32.totalorder %s216, %s219
    %p225 = scmp.eq.s32.totalorder %s17, 0
    %p226 = por %p224, %p225
    %p227 = scmp.ne.s32.totalorder %s216, %s219
    %p228 = scmp.eq.s32.totalorder %s22, 3
    %p229 = por %p227, %p228
    %p230 = scmp.ne.s32.totalorder %s219, %s220
    %p231 = scmp.eq.s32.totalorder %s22, 0
    %p232 = por %p230, %p231
    %p233 = scmp.ne.s32.totalorder %s219, %s220
    %p234 = scmp.eq.s32.totalorder %s23, 3
    %p235 = por %p233, %p234
    %p237 = scmp.ne.s32.totalorder %s220, %s236
    %p238 = scmp.eq.s32.totalorder %s23, 0
    %p239 = por %p237, %p238
    %s240 = ssub.s32 %s24, %s36
    %s241 = ssub.s32 %s25, %s32
    %s242 = sor.u32 %s240, %s241
    %p243 = scmp.eq.s32.totalorder %s242, 0
    %s245 = sadd.s32 %s244, 1
    %s246 = scalar_select %p243, %s244, %s245
    %p249 = pneg %p243
    %p250 = scmp.eq.s32.totalorder %s17, 3
    %p251 = por %p249, %p250
    %p252 = scmp.ne.s32.totalorder %s244, %s247
    %p253 = scmp.eq.s32.totalorder %s17, 0
    %p254 = por %p252, %p253
    %p255 = scmp.ne.s32.totalorder %s244, %s247
    %p256 = scmp.eq.s32.totalorder %s22, 3
    %p257 = por %p255, %p256
    %p258 = scmp.ne.s32.totalorder %s247, %s248
    %p259 = scmp.eq.s32.totalorder %s22, 0
    %p260 = por %p258, %p259
    %p261 = scmp.ne.s32.totalorder %s247, %s248
    %p262 = scmp.eq.s32.totalorder %s23, 3
    %p263 = por %p261, %p262
    %p265 = scmp.ne.s32.totalorder %s248, %s264
    %p266 = scmp.eq.s32.totalorder %s23, 0
    %p267 = por %p265, %p266
    %s268 = ssub.s32 %s24, %s36
    %s269 = ssub.s32 %s25, %s32
    %s270 = sor.u32 %s268, %s269
    %p271 = scmp.eq.s32.totalorder %s270, 0
    %s273 = sadd.s32 %s272, 1
    %s274 = scalar_select %p271, %s272, %s273
    %p277 = pneg %p271
    %p278 = scmp.eq.s32.totalorder %s17, 3
    %p279 = por %p277, %p278
    %p280 = scmp.ne.s32.totalorder %s272, %s275
    %p281 = scmp.eq.s32.totalorder %s17, 0
    %p282 = por %p280, %p281
    %p283 = scmp.ne.s32.totalorder %s272, %s275
    %p284 = scmp.eq.s32.totalorder %s22, 3
    %p285 = por %p283, %p284
    %p286 = scmp.ne.s32.totalorder %s275, %s276
    %p287 = scmp.eq.s32.totalorder %s22, 0
    %p288 = por %p286, %p287
    %p289 = scmp.ne.s32.totalorder %s275, %s276
    %p290 = scmp.eq.s32.totalorder %s23, 3
    %p291 = por %p289, %p290
    %p293 = scmp.ne.s32.totalorder %s276, %s292
    %p294 = scmp.eq.s32.totalorder %s23, 0
    %p295 = por %p293, %p294
    %p296 = scmp.le.s32.totalorder 1, %s17
    %p297 = scmp.lt.s32.totalorder %s17, 5
    %p298 = pnand %p296, %p297
    %p299 = pneg %p298
    // Predicated region
    $region9: #{tpu_custom_call.1} parent=5 // pred_check
      _
    $region10: #{tpu_custom_call.1} parent=5 // pred_check_branch
      %301 = sbr.rel (%p298) target = $region12
    $region11: #{tpu_custom_call.1} parent=5 // pred_region
      %s302 = ssub.s32 %s17, 1
      // Predicated region
      $region13: #{tpu_custom_call.1} parent=11 // pred_check
        %p303 = pneg %p78
      $region14: #{tpu_custom_call.1} parent=11 // pred_check_branch
        %305 = sbr.rel (%p303) target = $region16
      $region15: #{tpu_custom_call.1} parent=11 // pred_region
        _
      $region16: #{tpu_custom_call.1} parent=11 // pred_fallthru
        _
      // Predicated region
      $region17: #{tpu_custom_call.1} parent=11 // pred_check
        %p306 = pneg %p99
      $region18: #{tpu_custom_call.1} parent=11 // pred_check_branch
        %308 = sbr.rel (%p306) target = $region20
      $region19: #{tpu_custom_call.1} parent=11 // pred_region
        _
      $region20: #{tpu_custom_call.1} parent=11 // pred_fallthru
        _
      // Predicated region
      $region21: #{tpu_custom_call.1} parent=11 // pred_check
        %p309 = pneg %p120
      $region22: #{tpu_custom_call.1} parent=11 // pred_check_branch
        %311 = sbr.rel (%p309) target = $region24
      $region23: #{tpu_custom_call.1} parent=11 // pred_region
        _
      $region24: #{tpu_custom_call.1} parent=11 // pred_fallthru
        _
      // Predicated region
      $region25: #{tpu_custom_call.1} parent=11 // pred_check
        %p312 = pneg %p141
      $region26: #{tpu_custom_call.1} parent=11 // pred_check_branch
        %314 = sbr.rel (%p312) target = $region28
      $region27: #{tpu_custom_call.1} parent=11 // pred_region
        _
      $region28: #{tpu_custom_call.1} parent=11 // pred_fallthru
        _
      // Predicated region
      $region29: #{tpu_custom_call.1} parent=11 // pred_check
        %p315 = pneg %p162
      $region30: #{tpu_custom_call.1} parent=11 // pred_check_branch
        %317 = sbr.rel (%p315) target = $region32
      $region31: #{tpu_custom_call.1} parent=11 // pred_region
        _
      $region32: #{tpu_custom_call.1} parent=11 // pred_fallthru
        _
      // Predicated region
      $region33: #{tpu_custom_call.1} parent=11 // pred_check
        %p318 = pneg %p183
      $region34: #{tpu_custom_call.1} parent=11 // pred_check_branch
        %320 = sbr.rel (%p318) target = $region36
      $region35: #{tpu_custom_call.1} parent=11 // pred_region
        _
      $region36: #{tpu_custom_call.1} parent=11 // pred_fallthru
        _
      // Predicated region
      $region37: #{tpu_custom_call.1} parent=11 // pred_check
        %p321 = pneg %p204
      $region38: #{tpu_custom_call.1} parent=11 // pred_check_branch
        %323 = sbr.rel (%p321) target = $region40
      $region39: #{tpu_custom_call.1} parent=11 // pred_region
        _
      $region40: #{tpu_custom_call.1} parent=11 // pred_fallthru
        _
    $region12: #{tpu_custom_call.1} parent=5 // pred_fallthru
      _
    %p324 = scmp.lt.s32.totalorder %s17, 4
    // Predicated region
    $region41: #{tpu_custom_call.1} parent=5 // pred_check
      %p325 = pneg %p324
    $region42: #{tpu_custom_call.1} parent=5 // pred_check_branch
      %327 = sbr.rel (%p325) target = $region44
    $region43: #{tpu_custom_call.1} parent=5 // pred_region
      // Predicated region
      $region45: #{tpu_custom_call.1} parent=43 // pred_check
        %p328 = pneg %p51
      $region46: #{tpu_custom_call.1} parent=43 // pred_check_branch
        %330 = sbr.rel (%p328) target = $region48
      $region47: #{tpu_custom_call.1} parent=43 // pred_region
        %s331 = smul.u32 8, %s25
        %p332 = scmp.lt.s32.totalorder %s24, 1
        %s333 = scalar_select %p332, %s24, 1
        %p334 = scmp.lt.s32.totalorder %s331, 15
        %s335 = scalar_select %p334, %s331, 15
        %s336 = smul.addr %s333, 16
        %s337 = sadd.s32 %s335, %s336
        %s338 = smul.addr %s337, 8
        %s339 = scalar_lea.vmem %s0, %s338
        %s340 = smul.u32 8, %s25
      $region48: #{tpu_custom_call.1} parent=43 // pred_fallthru
        _
    $region44: #{tpu_custom_call.1} parent=5 // pred_fallthru
      _
    %p341 = scmp.le.s32.totalorder 1, %s17
    %p342 = scmp.lt.s32.totalorder %s17, 5
    %p343 = pnand %p341, %p342
    %p344 = pneg %p343
    // Predicated region
    $region49: #{tpu_custom_call.1} parent=5 // pred_check
      _
    $region50: #{tpu_custom_call.1} parent=5 // pred_check_branch
      %346 = sbr.rel (%p343) target = $region52
    $region51: #{tpu_custom_call.1} parent=5 // pred_region
      %s347 = ssub.s32 %s17, 1
      %s348 = smul.u32 8, %s27
      %p349 = scmp.lt.s32.totalorder %s26, 1
      %s350 = scalar_select %p349, %s26, 1
      %p351 = scmp.lt.s32.totalorder %s348, 15
      %s352 = scalar_select %p351, %s348, 15
      %s353 = smul.addr %s350, 16
      %s354 = sadd.s32 %s352, %s353
      %s355 = smul.addr %s354, 8
      %s356 = scalar_lea.vmem %s0, %s355
      %p357 = pneg %p57
      %p358 = pneg %p54
      %p359 = pneg %p78
      %p360 = pneg %p75
      %p361 = pneg %p99
      %p362 = pneg %p96
      %p363 = pneg %p120
      %p364 = pneg %p117
      %p365 = pneg %p141
      %p366 = pneg %p138
      %p367 = pneg %p162
      %p368 = pneg %p159
      %p369 = pneg %p183
      %p370 = pneg %p180
      %p371 = pneg %p204
      %p372 = pneg %p201
      %p373 = pneg %p232
      %p374 = pneg %p229
      %s375 = smul.u32 8, %s27
      %p376 = scmp.lt.s32.totalorder %s26, 1
      %s377 = scalar_select %p376, %s26, 1
      %p378 = scmp.lt.s32.totalorder %s375, 15
      %s379 = scalar_select %p378, %s375, 15
      %s380 = smul.addr %s377, 16
      %s381 = sadd.s32 %s379, %s380
      %s382 = smul.addr %s381, 8
      %s383 = scalar_lea.vmem %s8, %s382
      %p384 = pneg %p260
      %p385 = pneg %p257
      %s386 = smul.u32 8, %s27
      %p387 = scmp.lt.s32.totalorder %s26, 1
      %s388 = scalar_select %p387, %s26, 1
      %p389 = scmp.lt.s32.totalorder %s386, 15
      %s390 = scalar_select %p389, %s386, 15
      %s391 = smul.addr %s388, 16
      %s392 = sadd.s32 %s390, %s391
      %s393 = smul.addr %s392, 8
      %s394 = scalar_lea.vmem %s9, %s393
      %p395 = pneg %p288
      %p396 = pneg %p285
      %s397 = smul.u32 8, %s27
      %p398 = scmp.lt.s32.totalorder %s26, 1
      %s399 = scalar_select %p398, %s26, 1
      %p400 = scmp.lt.s32.totalorder %s397, 15
      %s401 = scalar_select %p400, %s397, 15
      %s402 = smul.addr %s399, 16
      %s403 = sadd.s32 %s401, %s402
      %s404 = smul.addr %s403, 8
      %s405 = scalar_lea.vmem %s10, %s404
      %s406 = smul.u32 8, %s27
      %p407 = scmp.lt.s32.totalorder %s26, 1
      %s408 = scalar_select %p407, %s26, 1
      %p409 = scmp.lt.s32.totalorder %s406, 15
      %s410 = scalar_select %p409, %s406, 15
      %s411 = smul.addr %s408, 16
      %s412 = sadd.s32 %s410, %s411
      %s413 = smul.addr %s412, 8
      %s414 = scalar_lea.vmem %s0, %s413
      %s415 = smul.u32 8, %s27
      %s416 = smul.u32 8, %s27
      %p417 = scmp.lt.s32.totalorder %s26, 1
      %s418 = scalar_select %p417, %s26, 1
      %p419 = scmp.lt.s32.totalorder %s416, 15
      %s420 = scalar_select %p419, %s416, 15
      %s421 = smul.addr %s418, 16
      %s422 = sadd.s32 %s420, %s421
      %s423 = smul.addr %s422, 8
      %s424 = scalar_lea.vmem %s8, %s423
      %s425 = smul.u32 8, %s27
      %s426 = smul.u32 8, %s27
      %p427 = scmp.lt.s32.totalorder %s26, 1
      %s428 = scalar_select %p427, %s26, 1
      %p429 = scmp.lt.s32.totalorder %s426, 15
      %s430 = scalar_select %p429, %s426, 15
      %s431 = smul.addr %s428, 16
      %s432 = sadd.s32 %s430, %s431
      %s433 = smul.addr %s432, 8
      %s434 = scalar_lea.vmem %s9, %s433
      %s435 = smul.u32 8, %s27
      %s436 = smul.u32 8, %s27
      %p437 = scmp.lt.s32.totalorder %s26, 1
      %s438 = scalar_select %p437, %s26, 1
      %p439 = scmp.lt.s32.totalorder %s436, 15
      %s440 = scalar_select %p439, %s436, 15
      %s441 = smul.addr %s438, 16
      %s442 = sadd.s32 %s440, %s441
      %s443 = smul.addr %s442, 8
      %s444 = scalar_lea.vmem %s10, %s443
      %s445 = smul.u32 8, %s27
      %v446 = vld [vmem:[%s414] sm:$0xff]
      %v447 = vld [vmem:[%s414 + $0x8] sm:$0xff]
      %v448 = vld [vmem:[%s414 + $0x10] sm:$0xff]
      %v449 = vld [vmem:[%s414 + $0x18] sm:$0xff]
      %v450 = vld [vmem:[%s414 + $0x20] sm:$0xff]
      %v451 = vld [vmem:[%s414 + $0x28] sm:$0xff]
      %v452 = vld [vmem:[%s414 + $0x30] sm:$0xff]
      %v453 = vld [vmem:[%s414 + $0x38] sm:$0xff]
      %v454 = vld [vmem:[%s1] sm:$0x1]
      %v455 = vmul.f32 %v446, %v446
      %v456 = vmul.f32 %v447, %v447
      %v457 = vmul.f32 %v448, %v448
      %v458 = vmul.f32 %v449, %v449
      %v459 = vmul.f32 %v450, %v450
      %v460 = vmul.f32 %v451, %v451
      %v461 = vmul.f32 %v452, %v452
      %v462 = vmul.f32 %v453, %v453
      %463 = vadd.xlane.f32.xlu0 %v455
      %v464 = vpop.xlane.xlu0 %463
      %465 = vadd.xlane.f32.xlu0 %v456
      %v466 = vpop.xlane.xlu0 %465
      %467 = vadd.xlane.f32.xlu0 %v457
      %v468 = vpop.xlane.xlu0 %467
      %469 = vadd.xlane.f32.xlu0 %v458
      %v470 = vpop.xlane.xlu0 %469
      %471 = vadd.xlane.f32.xlu0 %v459
      %v472 = vpop.xlane.xlu0 %471
      %473 = vadd.xlane.f32.xlu0 %v460
      %v474 = vpop.xlane.xlu0 %473
      %475 = vadd.xlane.f32.xlu0 %v461
      %v476 = vpop.xlane.xlu0 %475
      %477 = vadd.xlane.f32.xlu0 %v462
      %v478 = vpop.xlane.xlu0 %477
      %v479 = vrsqrt.pop %v464
      %v480 = vmul.f32 %v464, %v479
      %vm481 = vcmp.eq.f32.partialorder %v464, inf
      %v482 = vsel %vm481, %v464, %v480
      %vm483 = vcmp.eq.f32.partialorder %v464, 0.0
      %v484 = vand.u32 %v464, 2147483648
      %v485 = vsel %vm483, %v484, %v482
      %v486 = vrsqrt.pop %v466
      %v487 = vmul.f32 %v466, %v486
      %vm488 = vcmp.eq.f32.partialorder %v466, inf
      %v489 = vsel %vm488, %v466, %v487
      %vm490 = vcmp.eq.f32.partialorder %v466, 0.0
      %v491 = vand.u32 %v466, 2147483648
      %v492 = vsel %vm490, %v491, %v489
      %v493 = vrsqrt.pop %v468
      %v494 = vmul.f32 %v468, %v493
      %vm495 = vcmp.eq.f32.partialorder %v468, inf
      %v496 = vsel %vm495, %v468, %v494
      %vm497 = vcmp.eq.f32.partialorder %v468, 0.0
      %v498 = vand.u32 %v468, 2147483648
      %v499 = vsel %vm497, %v498, %v496
      %v500 = vrsqrt.pop %v470
      %v501 = vmul.f32 %v470, %v500
      %vm502 = vcmp.eq.f32.partialorder %v470, inf
      %v503 = vsel %vm502, %v470, %v501
      %vm504 = vcmp.eq.f32.partialorder %v470, 0.0
      %v505 = vand.u32 %v470, 2147483648
      %v506 = vsel %vm504, %v505, %v503
      %v507 = vrsqrt.pop %v472
      %v508 = vmul.f32 %v472, %v507
      %vm509 = vcmp.eq.f32.partialorder %v472, inf
      %v510 = vsel %vm509, %v472, %v508
      %vm511 = vcmp.eq.f32.partialorder %v472, 0.0
      %v512 = vand.u32 %v472, 2147483648
      %v513 = vsel %vm511, %v512, %v510
      %v514 = vrsqrt.pop %v474
      %v515 = vmul.f32 %v474, %v514
      %vm516 = vcmp.eq.f32.partialorder %v474, inf
      %v517 = vsel %vm516, %v474, %v515
      %vm518 = vcmp.eq.f32.partialorder %v474, 0.0
      %v519 = vand.u32 %v474, 2147483648
      %v520 = vsel %vm518, %v519, %v517
      %v521 = vrsqrt.pop %v476
      %v522 = vmul.f32 %v476, %v521
      %vm523 = vcmp.eq.f32.partialorder %v476, inf
      %v524 = vsel %vm523, %v476, %v522
      %vm525 = vcmp.eq.f32.partialorder %v476, 0.0
      %v526 = vand.u32 %v476, 2147483648
      %v527 = vsel %vm525, %v526, %v524
      %v528 = vrsqrt.pop %v478
      %v529 = vmul.f32 %v478, %v528
      %vm530 = vcmp.eq.f32.partialorder %v478, inf
      %v531 = vsel %vm530, %v478, %v529
      %vm532 = vcmp.eq.f32.partialorder %v478, 0.0
      %v533 = vand.u32 %v478, 2147483648
      %v534 = vsel %vm532, %v533, %v531
      %v535 = vmul.f32 %v485, 0.088388346
      %v536 = vmul.f32 %v492, 0.088388346
      %v537 = vmul.f32 %v499, 0.088388346
      %v538 = vmul.f32 %v506, 0.088388346
      %v539 = vmul.f32 %v513, 0.088388346
      %v540 = vmul.f32 %v520, 0.088388346
      %v541 = vmul.f32 %v527, 0.088388346
      %v542 = vmul.f32 %v534, 0.088388346
      %v543 = vadd.f32 %v535, 1e-08
      %v544 = vadd.f32 %v536, 1e-08
      %v545 = vadd.f32 %v537, 1e-08
      %v546 = vadd.f32 %v538, 1e-08
      %v547 = vadd.f32 %v539, 1e-08
      %v548 = vadd.f32 %v540, 1e-08
      %v549 = vadd.f32 %v541, 1e-08
      %v550 = vadd.f32 %v542, 1e-08
      %v551 = vrcp.pop %v543
      %v552 = vmul.f32 %v446, %v551
      %v553 = vrcp.pop %v544
      %v554 = vmul.f32 %v447, %v553
      %v555 = vrcp.pop %v545
      %v556 = vmul.f32 %v448, %v555
      %v557 = vrcp.pop %v546
      %v558 = vmul.f32 %v449, %v557
      %v559 = vrcp.pop %v547
      %v560 = vmul.f32 %v450, %v559
      %v561 = vrcp.pop %v548
      %v562 = vmul.f32 %v451, %v561
      %v563 = vrcp.pop %v549
      %v564 = vmul.f32 %v452, %v563
      %v565 = vrcp.pop %v550
      %v566 = vmul.f32 %v453, %v565
      %v568 = vlaneseq
      %v569 = vshrl.u32 %v568, 7
      %v570 = vsub.s32 0, %v569
      %v571 = vrot.slane %v454, %v570
      %v573 = vmul.f32 %v552, %v571
      %v574 = vmul.f32 %v554, %v571
      %v575 = vmul.f32 %v556, %v571
      %v576 = vmul.f32 %v558, %v571
      %v577 = vmul.f32 %v560, %v571
      %v578 = vmul.f32 %v562, %v571
      %v579 = vmul.f32 %v564, %v571
      %v580 = vmul.f32 %v566, %v571
      %v581 = vld [vmem:[%s2] sm:$0xff]
      %v582 = vld [vmem:[%s2 + $0x8] sm:$0xff]
      %v583 = vld [vmem:[%s2 + $0x10] sm:$0xff]
      %v584 = vld [vmem:[%s2 + $0x18] sm:$0xff]
      %v585 = vld [vmem:[%s2 + $0x20] sm:$0xff]
      %v586 = vld [vmem:[%s2 + $0x28] sm:$0xff]
      %v587 = vld [vmem:[%s2 + $0x30] sm:$0xff]
      %v588 = vld [vmem:[%s2 + $0x38] sm:$0xff]
      %v589 = vld [vmem:[%s2 + $0x40] sm:$0xff]
      %v590 = vld [vmem:[%s2 + $0x48] sm:$0xff]
      %v591 = vld [vmem:[%s2 + $0x50] sm:$0xff]
      %v592 = vld [vmem:[%s2 + $0x58] sm:$0xff]
      %v593 = vld [vmem:[%s2 + $0x60] sm:$0xff]
      %v594 = vld [vmem:[%s2 + $0x68] sm:$0xff]
      %v595 = vld [vmem:[%s2 + $0x70] sm:$0xff]
      %v596 = vld [vmem:[%s2 + $0x78] sm:$0xff]
      %v597 = vld [vmem:[%s3] sm:$0x1]
      %v599 = vlaneseq
      %v600 = vshrl.u32 %v599, 7
      %v601 = vsub.s32 0, %v600
      %v602 = vrot.slane %v597, %v601
      %604 = vmatprep.subr.mxu0 0.0
      %605 = vmatpush1.msra.mxu0 %v581
      %606 = vmatprep.subr.mxu0 0.0
      %607 = vmatpush1.msra.mxu0 %v582
      %608 = vmatprep.subr.mxu0 0.0
      %609 = vmatpush1.msra.mxu0 %v583
      %610 = vmatprep.subr.mxu0 0.0
      %611 = vmatpush1.msra.mxu0 %v584
      %612 = vmatprep.subr.mxu0 0.0
      %613 = vmatpush1.msra.mxu0 %v585
      %614 = vmatprep.subr.mxu0 0.0
      %615 = vmatpush1.msra.mxu0 %v586
      %616 = vmatprep.subr.mxu0 0.0
      %617 = vmatpush1.msra.mxu0 %v587
      %618 = vmatprep.subr.mxu0 0.0
      %619 = vmatpush1.msra.mxu0 %v588
      %620 = vmatprep.subr.mxu0 0.0
      %621 = vmatpush1.msra.mxu0 %v589
      %622 = vmatprep.subr.mxu0 0.0
      %623 = vmatpush1.msra.mxu0 %v590
      %624 = vmatprep.subr.mxu0 0.0
      %625 = vmatpush1.msra.mxu0 %v591
      %626 = vmatprep.subr.mxu0 0.0
      %627 = vmatpush1.msra.mxu0 %v592
      %628 = vmatprep.subr.mxu0 0.0
      %629 = vmatpush1.msra.mxu0 %v593
      %630 = vmatprep.subr.mxu0 0.0
      %631 = vmatpush1.msra.mxu0 %v594
      %632 = vmatprep.subr.mxu0 0.0
      %633 = vmatpush1.msra.mxu0 %v595
      %634 = vmatprep.subr.mxu0 0.0
      %635 = vmatpush1.msra.mxu0 %v596
      %636 = vmatprep.subr.mxu0 0.0
      %637 = vmatpush1.msra.mxu0 0.0
      %638 = vmatprep.subr.mxu0 0.0
      %639 = vmatpush1.msra.mxu0 0.0
      %640 = vmatprep.subr.mxu0 0.0
      %641 = vmatpush1.msra.mxu0 0.0
      %642 = vmatprep.subr.mxu0 0.0
      %643 = vmatpush1.msra.mxu0 0.0
      %644 = vmatprep.subr.mxu0 0.0
      %645 = vmatpush1.msra.mxu0 0.0
      %646 = vmatprep.subr.mxu0 0.0
      %647 = vmatpush1.msra.mxu0 0.0
      %648 = vmatprep.subr.mxu0 0.0
      %649 = vmatpush1.msra.mxu0 0.0
      %650 = vmatprep.subr.mxu0 0.0
      %651 = vmatpush1.msra.mxu0 0.0
      %652 = vmatprep.subr.mxu0 0.0
      %653 = vmatpush1.msra.mxu0 0.0
      %654 = vmatprep.subr.mxu0 0.0
      %655 = vmatpush1.msra.mxu0 0.0
      %656 = vmatprep.subr.mxu0 0.0
      %657 = vmatpush1.msra.mxu0 0.0
      %658 = vmatprep.subr.mxu0 0.0
      %659 = vmatpush1.msra.mxu0 0.0
      %660 = vmatprep.subr.mxu0 0.0
      %661 = vmatpush1.msra.mxu0 0.0
      %662 = vmatprep.subr.mxu0 0.0
      %663 = vmatpush1.msra.mxu0 0.0
      %664 = vmatprep.subr.mxu0 0.0
      %665 = vmatpush1.msra.mxu0 0.0
      %666 = vmatprep.subr.mxu0 0.0
      %667 = vmatpush1.msra.mxu0 0.0
      %668 = vmatprep.mubr.f32.mxu0 0.0
      %669 = vmatmul.mubr.f32.gmra.mrb[0].mxu0 %v573
      %v670 = vpop.f32.mrb[0].mxu0
      %v671 = vadd.f32 %v602, %v670
      %v672 = vpop.f32.mrb[0].mxu0
      %673 = vmatprep.mubr.f32.mxu0 0.0
      %674 = vmatmul.mubr.f32.gmra.mrb[0].mxu0 %v574
      %v675 = vpop.f32.mrb[0].mxu0
      %v676 = vadd.f32 %v602, %v675
      %v677 = vpop.f32.mrb[0].mxu0
      %678 = vmatprep.mubr.f32.mxu0 0.0
      %679 = vmatmul.mubr.f32.gmra.mrb[0].mxu0 %v575
      %v680 = vpop.f32.mrb[0].mxu0
      %v681 = vadd.f32 %v602, %v680
      %v682 = vpop.f32.mrb[0].mxu0
      %683 = vmatprep.mubr.f32.mxu0 0.0
      %684 = vmatmul.mubr.f32.gmra.mrb[0].mxu0 %v576
      %v685 = vpop.f32.mrb[0].mxu0
      %v686 = vadd.f32 %v602, %v685
      %v687 = vpop.f32.mrb[0].mxu0
      %688 = vmatprep.mubr.f32.mxu0 0.0
      %689 = vmatmul.mubr.f32.gmra.mrb[0].mxu0 %v577
      %v690 = vpop.f32.mrb[0].mxu0
      %v691 = vadd.f32 %v602, %v690
      %v692 = vpop.f32.mrb[0].mxu0
      %693 = vmatprep.mubr.f32.mxu0 0.0
      %694 = vmatmul.mubr.f32.gmra.mrb[0].mxu0 %v578
      %v695 = vpop.f32.mrb[0].mxu0
      %v696 = vadd.f32 %v602, %v695
      %v697 = vpop.f32.mrb[0].mxu0
      %698 = vmatprep.mubr.f32.mxu0 0.0
      %699 = vmatmul.mubr.f32.gmra.mrb[0].mxu0 %v579
      %v700 = vpop.f32.mrb[0].mxu0
      %v701 = vadd.f32 %v602, %v700
      %v702 = vpop.f32.mrb[0].mxu0
      %703 = vmatprep.mubr.f32.mxu0 0.0
      %704 = vmatmul.mubr.f32.gmra.mrb[0].mxu0 %v580
      %v705 = vpop.f32.mrb[0].mxu0
      %v706 = vadd.f32 %v602, %v705
      %v707 = vpop.f32.mrb[0].mxu0
      %708 = vdwg.mxu0
      %v709 = vld [vmem:[%s4] sm:$0xff]
      %v710 = vld [vmem:[%s4 + $0x8] sm:$0xff]
      %v711 = vld [vmem:[%s4 + $0x10] sm:$0xff]
      %v712 = vld [vmem:[%s4 + $0x18] sm:$0xff]
      %v713 = vld [vmem:[%s4 + $0x20] sm:$0xff]
      %v714 = vld [vmem:[%s4 + $0x28] sm:$0xff]
      %v715 = vld [vmem:[%s4 + $0x30] sm:$0xff]
      %v716 = vld [vmem:[%s4 + $0x38] sm:$0xff]
      %v717 = vld [vmem:[%s4 + $0x40] sm:$0xff]
      %v718 = vld [vmem:[%s4 + $0x48] sm:$0xff]
      %v719 = vld [vmem:[%s4 + $0x50] sm:$0xff]
      %v720 = vld [vmem:[%s4 + $0x58] sm:$0xff]
      %v721 = vld [vmem:[%s4 + $0x60] sm:$0xff]
      %v722 = vld [vmem:[%s4 + $0x68] sm:$0xff]
      %v723 = vld [vmem:[%s4 + $0x70] sm:$0xff]
      %v724 = vld [vmem:[%s4 + $0x78] sm:$0xff]
      %v725 = vld [vmem:[%s5] sm:$0x1]
      %v727 = vlaneseq
      %v728 = vshrl.u32 %v727, 7
      %v729 = vsub.s32 0, %v728
      %v730 = vrot.slane %v725, %v729
      %732 = vmatprep.subr.mxu0 0.0
      %733 = vmatpush1.msra.mxu0 %v709
      %734 = vmatprep.subr.mxu0 0.0
      %735 = vmatpush1.msra.mxu0 %v710
      %736 = vmatprep.subr.mxu0 0.0
      %737 = vmatpush1.msra.mxu0 %v711
      %738 = vmatprep.subr.mxu0 0.0
      %739 = vmatpush1.msra.mxu0 %v712
      %740 = vmatprep.subr.mxu0 0.0
      %741 = vmatpush1.msra.mxu0 %v713
      %742 = vmatprep.subr.mxu0 0.0
      %743 = vmatpush1.msra.mxu0 %v714
      %744 = vmatprep.subr.mxu0 0.0
      %745 = vmatpush1.msra.mxu0 %v715
      %746 = vmatprep.subr.mxu0 0.0
      %747 = vmatpush1.msra.mxu0 %v716
      %748 = vmatprep.subr.mxu0 0.0
      %749 = vmatpush1.msra.mxu0 %v717
      %750 = vmatprep.subr.mxu0 0.0
      %751 = vmatpush1.msra.mxu0 %v718
      %752 = vmatprep.subr.mxu0 0.0
      %753 = vmatpush1.msra.mxu0 %v719
      %754 = vmatprep.subr.mxu0 0.0
      %755 = vmatpush1.msra.mxu0 %v720
      %756 = vmatprep.subr.mxu0 0.0
      %757 = vmatpush1.msra.mxu0 %v721
      %758 = vmatprep.subr.mxu0 0.0
      %759 = vmatpush1.msra.mxu0 %v722
      %760 = vmatprep.subr.mxu0 0.0
      %761 = vmatpush1.msra.mxu0 %v723
      %762 = vmatprep.subr.mxu0 0.0
      %763 = vmatpush1.msra.mxu0 %v724
      %764 = vmatprep.subr.mxu0 0.0
      %765 = vmatpush1.msra.mxu0 0.0
      %766 = vmatprep.subr.mxu0 0.0
      %767 = vmatpush1.msra.mxu0 0.0
      %768 = vmatprep.subr.mxu0 0.0
      %769 = vmatpush1.msra.mxu0 0.0
      %770 = vmatprep.subr.mxu0 0.0
      %771 = vmatpush1.msra.mxu0 0.0
      %772 = vmatprep.subr.mxu0 0.0
      %773 = vmatpush1.msra.mxu0 0.0
      %774 = vmatprep.subr.mxu0 0.0
      %775 = vmatpush1.msra.mxu0 0.0
      %776 = vmatprep.subr.mxu0 0.0
      %777 = vmatpush1.msra.mxu0 0.0
      %778 = vmatprep.subr.mxu0 0.0
      %779 = vmatpush1.msra.mxu0 0.0
      %780 = vmatprep.subr.mxu0 0.0
      %781 = vmatpush1.msra.mxu0 0.0
      %782 = vmatprep.subr.mxu0 0.0
      %783 = vmatpush1.msra.mxu0 0.0
      %784 = vmatprep.subr.mxu0 0.0
      %785 = vmatpush1.msra.mxu0 0.0
      %786 = vmatprep.subr.mxu0 0.0
      %787 = vmatpush1.msra.mxu0 0.0
      %788 = vmatprep.subr.mxu0 0.0
      %789 = vmatpush1.msra.mxu0 0.0
      %790 = vmatprep.subr.mxu0 0.0
      %791 = vmatpush1.msra.mxu0 0.0
      %792 = vmatprep.subr.mxu0 0.0
      %793 = vmatpush1.msra.mxu0 0.0
      %794 = vmatprep.subr.mxu0 0.0
      %795 = vmatpush1.msra.mxu0 0.0
      %796 = vmatprep.mubr.f32.mxu0 0.0
      %797 = vmatmul.mubr.f32.gmra.mrb[0].mxu0 %v573
      %v798 = vpop.f32.mrb[0].mxu0
      %v799 = vadd.f32 %v730, %v798
      %v800 = vpop.f32.mrb[0].mxu0
      %801 = vmatprep.mubr.f32.mxu0 0.0
      %802 = vmatmul.mubr.f32.gmra.mrb[0].mxu0 %v574
      %v803 = vpop.f32.mrb[0].mxu0
      %v804 = vadd.f32 %v730, %v803
      %v805 = vpop.f32.mrb[0].mxu0
      %806 = vmatprep.mubr.f32.mxu0 0.0
      %807 = vmatmul.mubr.f32.gmra.mrb[0].mxu0 %v575
      %v808 = vpop.f32.mrb[0].mxu0
      %v809 = vadd.f32 %v730, %v808
      %v810 = vpop.f32.mrb[0].mxu0
      %811 = vmatprep.mubr.f32.mxu0 0.0
      %812 = vmatmul.mubr.f32.gmra.mrb[0].mxu0 %v576
      %v813 = vpop.f32.mrb[0].mxu0
      %v814 = vadd.f32 %v730, %v813
      %v815 = vpop.f32.mrb[0].mxu0
      %816 = vmatprep.mubr.f32.mxu0 0.0
      %817 = vmatmul.mubr.f32.gmra.mrb[0].mxu0 %v577
      %v818 = vpop.f32.mrb[0].mxu0
      %v819 = vadd.f32 %v730, %v818
      %v820 = vpop.f32.mrb[0].mxu0
      %821 = vmatprep.mubr.f32.mxu0 0.0
      %822 = vmatmul.mubr.f32.gmra.mrb[0].mxu0 %v578
      %v823 = vpop.f32.mrb[0].mxu0
      %v824 = vadd.f32 %v730, %v823
      %v825 = vpop.f32.mrb[0].mxu0
      %826 = vmatprep.mubr.f32.mxu0 0.0
      %827 = vmatmul.mubr.f32.gmra.mrb[0].mxu0 %v579
      %v828 = vpop.f32.mrb[0].mxu0
      %v829 = vadd.f32 %v730, %v828
      %v830 = vpop.f32.mrb[0].mxu0
      %831 = vmatprep.mubr.f32.mxu0 0.0
      %832 = vmatmul.mubr.f32.gmra.mrb[0].mxu0 %v580
      %v833 = vpop.f32.mrb[0].mxu0
      %v834 = vadd.f32 %v730, %v833
      %v835 = vpop.f32.mrb[0].mxu0
      %836 = vdwg.mxu0
      %v837 = vld [vmem:[%s6] sm:$0xff]
      %v838 = vld [vmem:[%s6 + $0x8] sm:$0xff]
      %v839 = vld [vmem:[%s6 + $0x10] sm:$0xff]
      %v840 = vld [vmem:[%s6 + $0x18] sm:$0xff]
      %v841 = vld [vmem:[%s6 + $0x20] sm:$0xff]
      %v842 = vld [vmem:[%s6 + $0x28] sm:$0xff]
      %v843 = vld [vmem:[%s6 + $0x30] sm:$0xff]
      %v844 = vld [vmem:[%s6 + $0x38] sm:$0xff]
      %v845 = vld [vmem:[%s6 + $0x40] sm:$0xff]
      %v846 = vld [vmem:[%s6 + $0x48] sm:$0xff]
      %v847 = vld [vmem:[%s6 + $0x50] sm:$0xff]
      %v848 = vld [vmem:[%s6 + $0x58] sm:$0xff]
      %v849 = vld [vmem:[%s6 + $0x60] sm:$0xff]
      %v850 = vld [vmem:[%s6 + $0x68] sm:$0xff]
      %v851 = vld [vmem:[%s6 + $0x70] sm:$0xff]
      %v852 = vld [vmem:[%s6 + $0x78] sm:$0xff]
      %v853 = vld [vmem:[%s7] sm:$0x1]
      %v855 = vlaneseq
      %v856 = vshrl.u32 %v855, 7
      %v857 = vsub.s32 0, %v856
      %v858 = vrot.slane %v853, %v857
      %860 = vmatprep.subr.mxu0 0.0
      %861 = vmatpush1.msra.mxu0 %v837
      %862 = vmatprep.subr.mxu0 0.0
      %863 = vmatpush1.msra.mxu0 %v838
      %864 = vmatprep.subr.mxu0 0.0
      %865 = vmatpush1.msra.mxu0 %v839
      %866 = vmatprep.subr.mxu0 0.0
      %867 = vmatpush1.msra.mxu0 %v840
      %868 = vmatprep.subr.mxu0 0.0
      %869 = vmatpush1.msra.mxu0 %v841
      %870 = vmatprep.subr.mxu0 0.0
      %871 = vmatpush1.msra.mxu0 %v842
      %872 = vmatprep.subr.mxu0 0.0
      %873 = vmatpush1.msra.mxu0 %v843
      %874 = vmatprep.subr.mxu0 0.0
      %875 = vmatpush1.msra.mxu0 %v844
      %876 = vmatprep.subr.mxu0 0.0
      %877 = vmatpush1.msra.mxu0 %v845
      %878 = vmatprep.subr.mxu0 0.0
      %879 = vmatpush1.msra.mxu0 %v846
      %880 = vmatprep.subr.mxu0 0.0
      %881 = vmatpush1.msra.mxu0 %v847
      %882 = vmatprep.subr.mxu0 0.0
      %883 = vmatpush1.msra.mxu0 %v848
      %884 = vmatprep.subr.mxu0 0.0
      %885 = vmatpush1.msra.mxu0 %v849
      %886 = vmatprep.subr.mxu0 0.0
      %887 = vmatpush1.msra.mxu0 %v850
      %888 = vmatprep.subr.mxu0 0.0
      %889 = vmatpush1.msra.mxu0 %v851
      %890 = vmatprep.subr.mxu0 0.0
      %891 = vmatpush1.msra.mxu0 %v852
      %892 = vmatprep.subr.mxu0 0.0
      %893 = vmatpush1.msra.mxu0 0.0
      %894 = vmatprep.subr.mxu0 0.0
      %895 = vmatpush1.msra.mxu0 0.0
      %896 = vmatprep.subr.mxu0 0.0
      %897 = vmatpush1.msra.mxu0 0.0
      %898 = vmatprep.subr.mxu0 0.0
      %899 = vmatpush1.msra.mxu0 0.0
      %900 = vmatprep.subr.mxu0 0.0
      %901 = vmatpush1.msra.mxu0 0.0
      %902 = vmatprep.subr.mxu0 0.0
      %903 = vmatpush1.msra.mxu0 0.0
      %904 = vmatprep.subr.mxu0 0.0
      %905 = vmatpush1.msra.mxu0 0.0
      %906 = vmatprep.subr.mxu0 0.0
      %907 = vmatpush1.msra.mxu0 0.0
      %908 = vmatprep.subr.mxu0 0.0
      %909 = vmatpush1.msra.mxu0 0.0
      %910 = vmatprep.subr.mxu0 0.0
      %911 = vmatpush1.msra.mxu0 0.0
      %912 = vmatprep.subr.mxu0 0.0
      %913 = vmatpush1.msra.mxu0 0.0
      %914 = vmatprep.subr.mxu0 0.0
      %915 = vmatpush1.msra.mxu0 0.0
      %916 = vmatprep.subr.mxu0 0.0
      %917 = vmatpush1.msra.mxu0 0.0
      %918 = vmatprep.subr.mxu0 0.0
      %919 = vmatpush1.msra.mxu0 0.0
      %920 = vmatprep.subr.mxu0 0.0
      %921 = vmatpush1.msra.mxu0 0.0
      %922 = vmatprep.subr.mxu0 0.0
      %923 = vmatpush1.msra.mxu0 0.0
      %924 = vmatprep.mubr.f32.mxu0 0.0
      %925 = vmatmul.mubr.f32.gmra.mrb[0].mxu0 %v573
      %v926 = vpop.f32.mrb[0].mxu0
      %v927 = vadd.f32 %v858, %v926
      %v928 = vpop.f32.mrb[0].mxu0
      %929 = vmatprep.mubr.f32.mxu0 0.0
      %930 = vmatmul.mubr.f32.gmra.mrb[0].mxu0 %v574
      %v931 = vpop.f32.mrb[0].mxu0
      %v932 = vadd.f32 %v858, %v931
      %v933 = vpop.f32.mrb[0].mxu0
      %934 = vmatprep.mubr.f32.mxu0 0.0
      %935 = vmatmul.mubr.f32.gmra.mrb[0].mxu0 %v575
      %v936 = vpop.f32.mrb[0].mxu0
      %v937 = vadd.f32 %v858, %v936
      %v938 = vpop.f32.mrb[0].mxu0
      %939 = vmatprep.mubr.f32.mxu0 0.0
      %940 = vmatmul.mubr.f32.gmra.mrb[0].mxu0 %v576
      %v941 = vpop.f32.mrb[0].mxu0
      %v942 = vadd.f32 %v858, %v941
      %v943 = vpop.f32.mrb[0].mxu0
      %944 = vmatprep.mubr.f32.mxu0 0.0
      %945 = vmatmul.mubr.f32.gmra.mrb[0].mxu0 %v577
      %v946 = vpop.f32.mrb[0].mxu0
      %v947 = vadd.f32 %v858, %v946
      %v948 = vpop.f32.mrb[0].mxu0
      %949 = vmatprep.mubr.f32.mxu0 0.0
      %950 = vmatmul.mubr.f32.gmra.mrb[0].mxu0 %v578
      %v951 = vpop.f32.mrb[0].mxu0
      %v952 = vadd.f32 %v858, %v951
      %v953 = vpop.f32.mrb[0].mxu0
      %954 = vmatprep.mubr.f32.mxu0 0.0
      %955 = vmatmul.mubr.f32.gmra.mrb[0].mxu0 %v579
      %v956 = vpop.f32.mrb[0].mxu0
      %v957 = vadd.f32 %v858, %v956
      %v958 = vpop.f32.mrb[0].mxu0
      %959 = vmatprep.mubr.f32.mxu0 0.0
      %960 = vmatmul.mubr.f32.gmra.mrb[0].mxu0 %v580
      %v961 = vpop.f32.mrb[0].mxu0
      %v962 = vadd.f32 %v858, %v961
      %v963 = vpop.f32.mrb[0].mxu0
      %964 = vdwg.mxu0
      %vm965 = vcmask 261120
      %966 = vst.msk [vmem:[%s424] sm:$0xff] %vm965, %v671
      %967 = vst.msk [vmem:[%s424 + $0x8] sm:$0xff] %vm965, %v676
      %968 = vst.msk [vmem:[%s424 + $0x10] sm:$0xff] %vm965, %v681
      %969 = vst.msk [vmem:[%s424 + $0x18] sm:$0xff] %vm965, %v686
      %970 = vst.msk [vmem:[%s424 + $0x20] sm:$0xff] %vm965, %v691
      %971 = vst.msk [vmem:[%s424 + $0x28] sm:$0xff] %vm965, %v696
      %972 = vst.msk [vmem:[%s424 + $0x30] sm:$0xff] %vm965, %v701
      %973 = vst.msk [vmem:[%s424 + $0x38] sm:$0xff] %vm965, %v706
      %974 = vst.msk [vmem:[%s434] sm:$0xff] %vm965, %v799
      %975 = vst.msk [vmem:[%s434 + $0x8] sm:$0xff] %vm965, %v804
      %976 = vst.msk [vmem:[%s434 + $0x10] sm:$0xff] %vm965, %v809
      %977 = vst.msk [vmem:[%s434 + $0x18] sm:$0xff] %vm965, %v814
      %978 = vst.msk [vmem:[%s434 + $0x20] sm:$0xff] %vm965, %v819
      %979 = vst.msk [vmem:[%s434 + $0x28] sm:$0xff] %vm965, %v824
      %980 = vst.msk [vmem:[%s434 + $0x30] sm:$0xff] %vm965, %v829
      %981 = vst.msk [vmem:[%s434 + $0x38] sm:$0xff] %vm965, %v834
      %982 = vst.msk [vmem:[%s444] sm:$0xff] %vm965, %v927
      %983 = vst.msk [vmem:[%s444 + $0x8] sm:$0xff] %vm965, %v932
      %984 = vst.msk [vmem:[%s444 + $0x10] sm:$0xff] %vm965, %v937
      %985 = vst.msk [vmem:[%s444 + $0x18] sm:$0xff] %vm965, %v942
      %986 = vst.msk [vmem:[%s444 + $0x20] sm:$0xff] %vm965, %v947
      %987 = vst.msk [vmem:[%s444 + $0x28] sm:$0xff] %vm965, %v952
      %988 = vst.msk [vmem:[%s444 + $0x30] sm:$0xff] %vm965, %v957
      %989 = vst.msk [vmem:[%s444 + $0x38] sm:$0xff] %vm965, %v962
      %s990 = smul.u32 8, %s27
      %p991 = scmp.lt.s32.totalorder %s26, 1
      %s992 = scalar_select %p991, %s26, 1
      %p993 = scmp.lt.s32.totalorder %s990, 15
      %s994 = scalar_select %p993, %s990, 15
      %s995 = smul.addr %s992, 16
      %s996 = sadd.s32 %s994, %s995
      %s997 = smul.addr %s996, 8
      %s998 = scalar_lea.vmem %s8, %s997
      %s999 = smul.u32 8, %s27
      %p1000 = scmp.lt.s32.totalorder %s26, 1
      %s1001 = scalar_select %p1000, %s26, 1
      %p1002 = scmp.lt.s32.totalorder %s999, 15
      %s1003 = scalar_select %p1002, %s999, 15
      %s1004 = smul.addr %s1001, 16
      %s1005 = sadd.s32 %s1003, %s1004
      %s1006 = smul.addr %s1005, 8
      %s1007 = scalar_lea.vmem %s9, %s1006
      %s1008 = smul.u32 8, %s27
      %p1009 = scmp.lt.s32.totalorder %s26, 1
      %s1010 = scalar_select %p1009, %s26, 1
      %p1011 = scmp.lt.s32.totalorder %s1008, 15
      %s1012 = scalar_select %p1011, %s1008, 15
      %s1013 = smul.addr %s1010, 16
      %s1014 = sadd.s32 %s1012, %s1013
      %s1015 = smul.addr %s1014, 8
      %s1016 = scalar_lea.vmem %s10, %s1015
      // Predicated region
      $region53: #{tpu_custom_call.1} parent=51 // pred_check
        %p1017 = pneg %p229
      $region54: #{tpu_custom_call.1} parent=51 // pred_check_branch
        %1019 = sbr.rel (%p1017) target = $region56
      $region55: #{tpu_custom_call.1} parent=51 // pred_region
        %s1020 = smul.u32 8, %s27
      $region56: #{tpu_custom_call.1} parent=51 // pred_fallthru
        _
      // Predicated region
      $region57: #{tpu_custom_call.1} parent=51 // pred_check
        %p1021 = pneg %p257
      $region58: #{tpu_custom_call.1} parent=51 // pred_check_branch
        %1023 = sbr.rel (%p1021) target = $region60
      $region59: #{tpu_custom_call.1} parent=51 // pred_region
        %s1024 = smul.u32 8, %s27
      $region60: #{tpu_custom_call.1} parent=51 // pred_fallthru
        _
      // Predicated region
      $region61: #{tpu_custom_call.1} parent=51 // pred_check
        %p1025 = pneg %p285
      $region62: #{tpu_custom_call.1} parent=51 // pred_check_branch
        %1027 = sbr.rel (%p1025) target = $region64
      $region63: #{tpu_custom_call.1} parent=51 // pred_region
        %s1028 = smul.u32 8, %s27
      $region64: #{tpu_custom_call.1} parent=51 // pred_fallthru
        _
    $region52: #{tpu_custom_call.1} parent=5 // pred_fallthru
      _
    %p1029 = scmp.le.s32.totalorder 2, %s17
    // Predicated region
    $region65: #{tpu_custom_call.1} parent=5 // pred_check
      %p1030 = pneg %p1029
    $region66: #{tpu_custom_call.1} parent=5 // pred_check_branch
      %1032 = sbr.rel (%p1030) target = $region68
    $region67: #{tpu_custom_call.1} parent=5 // pred_region
      %s1033 = ssub.s32 %s17, 2
      // Predicated region
      $region69: #{tpu_custom_call.1} parent=67 // pred_check
        %p1034 = pneg %p235
      $region70: #{tpu_custom_call.1} parent=67 // pred_check_branch
        %1036 = sbr.rel (%p1034) target = $region72
      $region71: #{tpu_custom_call.1} parent=67 // pred_region
        %s1037 = smul.u32 8, %s29
        %p1038 = scmp.lt.s32.totalorder %s28, 1
        %s1039 = scalar_select %p1038, %s28, 1
        %p1040 = scmp.lt.s32.totalorder %s1037, 15
        %s1041 = scalar_select %p1040, %s1037, 15
        %s1042 = smul.addr %s1039, 16
        %s1043 = sadd.s32 %s1041, %s1042
        %s1044 = smul.addr %s1043, 8
        %s1045 = scalar_lea.vmem %s8, %s1044
      $region72: #{tpu_custom_call.1} parent=67 // pred_fallthru
        _
      // Predicated region
      $region73: #{tpu_custom_call.1} parent=67 // pred_check
        %p1046 = pneg %p263
      $region74: #{tpu_custom_call.1} parent=67 // pred_check_branch
        %1048 = sbr.rel (%p1046) target = $region76
      $region75: #{tpu_custom_call.1} parent=67 // pred_region
        %s1049 = smul.u32 8, %s29
        %p1050 = scmp.lt.s32.totalorder %s28, 1
        %s1051 = scalar_select %p1050, %s28, 1
        %p1052 = scmp.lt.s32.totalorder %s1049, 15
        %s1053 = scalar_select %p1052, %s1049, 15
        %s1054 = smul.addr %s1051, 16
        %s1055 = sadd.s32 %s1053, %s1054
        %s1056 = smul.addr %s1055, 8
        %s1057 = scalar_lea.vmem %s9, %s1056
      $region76: #{tpu_custom_call.1} parent=67 // pred_fallthru
        _
      // Predicated region
      $region77: #{tpu_custom_call.1} parent=67 // pred_check
        %p1058 = pneg %p291
      $region78: #{tpu_custom_call.1} parent=67 // pred_check_branch
        %1060 = sbr.rel (%p1058) target = $region80
      $region79: #{tpu_custom_call.1} parent=67 // pred_region
        %s1061 = smul.u32 8, %s29
        %p1062 = scmp.lt.s32.totalorder %s28, 1
        %s1063 = scalar_select %p1062, %s28, 1
        %p1064 = scmp.lt.s32.totalorder %s1061, 15
        %s1065 = scalar_select %p1064, %s1061, 15
        %s1066 = smul.addr %s1063, 16
        %s1067 = sadd.s32 %s1065, %s1066
        %s1068 = smul.addr %s1067, 8
        %s1069 = scalar_lea.vmem %s10, %s1068
      $region80: #{tpu_custom_call.1} parent=67 // pred_fallthru
        _
    $region68: #{tpu_custom_call.1} parent=5 // pred_fallthru
      _
  $region6: #{tpu_custom_call.1} parent=0 // loop_footer
    %s21 = sadd.s32 1, %s17
  $region7: #{tpu_custom_call.1} parent=0 // loop_footer_branch
    %16 = sbr.rel target = $region3
  $region8: #{tpu_custom_call.1} parent=0 // loop_exit
    _

</llo_original>
